<compile_context>
chip_gen: v6e
topology: v6e:2x2x1
jax: 0.10.0
libtpu: 0.0.40
codegen_flags: <defaults>
</compile_context>

<pallas_src>
import numpy as np
import jax
import jax.numpy as jnp
from jax.experimental import pallas as pl
from jax.experimental.pallas import tpu as pltpu


def build_pos_enc_table(max_seq_len: int, d_model: int, pad_idx: int,
                        dtype=jnp.float32) -> jnp.ndarray:
    """Deterministic parameter construction (matches the module's __init__)."""
    pos_enc = np.array(
        [[pos / np.power(10000, 2.0 * (i // 2) / d_model) for i in range(d_model)]
         for pos in range(max_seq_len)], dtype=np.float64)
    pos_enc[:, 0::2] = np.sin(pos_enc[:, 0::2])
    pos_enc[:, 1::2] = np.cos(pos_enc[:, 1::2])
    pos_enc[pad_idx] = 0.0
    return jnp.asarray(pos_enc, dtype=dtype)


def _make_gather_kernel(fuse_add: bool):
    """Gather kernel: one_hot(ids, LK) @ table_block, accumulated over L-blocks."""

    def kernel(*refs):
        if fuse_add:
            ids_ref, table_ref, tok_ref, out_ref, acc_ref = refs
        else:
            ids_ref, table_ref, out_ref, acc_ref = refs
            tok_ref = None

        l = pl.program_id(1)                     # L-block index ("arbitrary" axis)

        @pl.when(l == 0)
        def _():
            acc_ref[...] = jnp.zeros_like(acc_ref)

        tq = ids_ref.shape[0]
        lk = table_ref.shape[0]

        ids = ids_ref[...]                                            # (TQ, 1) i32
        col = jax.lax.broadcasted_iota(jnp.int32, (tq, lk), 1) + l * lk
        # Compare in int32 (no bf16 VALU dependence on v5e), cast only for MXU.
        one_hot = (col == ids).astype(table_ref.dtype)                # (TQ, LK)

        acc_ref[...] += jnp.dot(one_hot, table_ref[...],
                                preferred_element_type=jnp.float32,
                                precision=jax.lax.Precision.HIGHEST)  # bit-exact rows

        @pl.when(l == pl.num_programs(1) - 1)
        def _():
            rows = acc_ref[...]
            if fuse_add:
                rows = rows + tok_ref[...].astype(jnp.float32)
            out_ref[...] = rows.astype(out_ref.dtype)

    return kernel


def positional_encoding_forward(src_seq: jnp.ndarray,
                                table: jnp.ndarray,
                                *,
                                tok_embed: jnp.ndarray | None = None,
                                tile_rows: int = 512,
                                table_block_rows: int = 1024,
                                out_dtype=None) -> jnp.ndarray:
    """out[b, s, :] = table[src_seq[b, s], :]  (+ tok_embed[b, s, :] if given).

    Out-of-range ids produce zero rows (not an error) — differs from
    nn.Embedding, which would raise.
    """
    B, S = src_seq.shape
    L, D = table.shape
    out_dtype = table.dtype if out_dtype is None else out_dtype

    flat_ids = src_seq.reshape(-1).astype(jnp.int32)
    n = flat_ids.shape[0]
    n8 = pl.cdiv(n, 8) * 8

    # --- id tiling: large sublane-dense tiles; keep >=2 tiles for v7x megacore.
    tile_rows = max(8, (tile_rows // 8) * 8)
    tq = min(tile_rows, n8)
    if tq == n8 and n8 >= 16:
        tq = pl.cdiv(pl.cdiv(n8, 2), 8) * 8

    padded_n = pl.cdiv(n, tq) * tq
    if padded_n != n:
        flat_ids = jnp.pad(flat_ids, (0, padded_n - n))   # pad ids gather row 0; sliced off below
    ids_2d = flat_ids.reshape(padded_n, 1)
    n_tiles = padded_n // tq

    # --- table blocking along L (bounds the one-hot to (tq, lk)).
    table_block_rows = max(8, (table_block_rows // 8) * 8)
    lk = min(table_block_rows, pl.cdiv(L, 8) * 8)
    padded_L = pl.cdiv(L, lk) * lk
    table_p = jnp.pad(table, ((0, padded_L - L), (0, 0))) if padded_L != L else table
    n_lblk = padded_L // lk

    fuse_add = tok_embed is not None
    args = [ids_2d, table_p]
    in_specs = [
        pl.BlockSpec((tq, 1), lambda i, l: (i, 0)),        # ids tile
        pl.BlockSpec((lk, D), lambda i, l: (l, 0)),        # table L-block (VMEM resident per l)
    ]
    if fuse_add:
        tok_flat = tok_embed.reshape(-1, D)
        if padded_n != n:
            tok_flat = jnp.pad(tok_flat, ((0, padded_n - n), (0, 0)))
        args.append(tok_flat)
        in_specs.append(pl.BlockSpec((tq, D), lambda i, l: (i, 0)))

    # --- VMEM budget (double-buffered tiles + one-hot + accumulator), clamped to v7x physical.
    t_item = jnp.dtype(table.dtype).itemsize
    o_item = jnp.dtype(out_dtype).itemsize
    est = (2 * tq * 4                      # ids
           + 2 * lk * D * t_item           # table block
           + 2 * tq * D * o_item           # output tile
           + tq * D * 4                    # f32 accumulator scratch
           + 2 * tq * lk * 4)              # one-hot + matmul temporaries
    if fuse_add:
        est += 2 * tq * D * jnp.dtype(tok_embed.dtype).itemsize
    vmem_limit = int(min(64 << 20, max(32 << 20, 2 * est)))

    out_flat = pl.pallas_call(
        _make_gather_kernel(fuse_add),
        out_shape=jax.ShapeDtypeStruct((padded_n, D), out_dtype),
        grid=(n_tiles, n_lblk),
        in_specs=in_specs,
        out_specs=pl.BlockSpec((tq, D), lambda i, l: (i, 0)),
        scratch_shapes=[pltpu.VMEM((tq, D), jnp.float32)],
        compiler_params=pltpu.CompilerParams(
            dimension_semantics=("parallel", "arbitrary"),  # id tiles independent; L is a reduction
            vmem_limit_bytes=vmem_limit,
        ),
    )(*args)

    return out_flat[:n].reshape(B, S, D)


if __name__ == "__main__":
    max_seq_len = 16
    d_model = 32
    pad_idx = 0
    batch, seq = 2, 8

    table = build_pos_enc_table(max_seq_len, d_model, pad_idx)

    key = jax.random.PRNGKey(0)
    k_ids, k_tok = jax.random.split(key)
    src_seq = jax.random.randint(k_ids, (batch, seq), 0, max_seq_len, dtype=jnp.int32)

    # 1) Plain module semantics: positional-encoding row gather.
    out = positional_encoding_forward(src_seq, table)
    out = jax.block_until_ready(out)
    ref = jnp.take(table, src_seq.reshape(-1), axis=0).reshape(batch, seq, d_model)
    np.testing.assert_allclose(np.asarray(out), np.asarray(ref), rtol=1e-6, atol=1e-6)

    # 2) Fused-consumer path (token-embedding add), per perf review.
    tok = jax.random.normal(k_tok, (batch, seq, d_model), dtype=jnp.float32)
    out_fused = positional_encoding_forward(src_seq, table, tok_embed=tok)
    out_fused = jax.block_until_ready(out_fused)
    np.testing.assert_allclose(np.asarray(out_fused), np.asarray(ref + tok),
                               rtol=1e-5, atol=1e-5)

    print("KERNEL_OK")
</pallas_src>

<mosaic_0001>
module attributes {stable_mosaic.version = 11 : i64} {
  func.func @kernel(%arg0: i32, %arg1: i32, %arg2: memref<8x1xi32, #tpu.memory_space<vmem>>, %arg3: memref<16x32xf32, #tpu.memory_space<vmem>>, %arg4: memref<8x32xf32, #tpu.memory_space<vmem>>, %arg5: memref<8x32xf32, #tpu.memory_space<vmem>>) attributes {dimension_semantics = [#tpu.dimension_semantics<parallel>, #tpu.dimension_semantics<arbitrary>], iteration_bounds = array<i64: 2, 1>, scalar_prefetch = 0 : i64, scratch_operands = 1 : i64, tpu.core_type = #tpu.core_type<tc>, window_params = [{transform_indices = @transform_0, window_bounds = array<i64: 8, 1>}, {transform_indices = @transform_1, window_bounds = array<i64: 16, 32>}, {transform_indices = @transform_2, window_bounds = array<i64: 8, 32>}]} {
    %c0_i32 = arith.constant 0 : i32
    %0 = arith.cmpi eq, %arg1, %c0_i32 : i32
    %1 = arith.extui %0 : i1 to i32
    %c0_i32_0 = arith.constant 0 : i32
    %2 = arith.cmpi ne, %1, %c0_i32_0 : i32
    scf.if %2 {
      %cst_10 = arith.constant 0.000000e+00 : f32
      %20 = vector.broadcast %cst_10 : f32 to vector<8x32xf32>
      %c0_11 = arith.constant 0 : index
      %c0_12 = arith.constant 0 : index
      %21 = vector.load %arg5[%c0_11, %c0_12] : memref<8x32xf32, #tpu.memory_space<vmem>>, vector<8x32xf32>
      tpu.vector_store %arg5[%c0_11, %c0_12], %20 {strides = array<i32>} : memref<8x32xf32, #tpu.memory_space<vmem>>, vector<8x32xf32>,
    } else {
    }
    %c0 = arith.constant 0 : index
    %c0_1 = arith.constant 0 : index
    %3 = vector.load %arg2[%c0, %c0_1] : memref<8x1xi32, #tpu.memory_space<vmem>>, vector<8x1xi32>
    %4 = tpu.iota {dimensions = array<i32: 1>} : vector<8x16xi32>
    %c16_i32 = arith.constant 16 : i32
    %5 = arith.muli %arg1, %c16_i32 : i32
    %6 = vector.broadcast %5 : i32 to vector<8x16xi32>
    %7 = arith.addi %4, %6 : vector<8x16xi32>
    %8 = vector.broadcast %3 : vector<8x1xi32> to vector<8x16xi32>
    %9 = arith.cmpi eq, %7, %8 : vector<8x16xi32>
    %10 = arith.extui %9 : vector<8x16xi1> to vector<8x16xi32>
    %11 = arith.sitofp %10 : vector<8x16xi32> to vector<8x16xf32>
    %c0_2 = arith.constant 0 : index
    %c0_3 = arith.constant 0 : index
    %12 = vector.load %arg5[%c0_2, %c0_3] : memref<8x32xf32, #tpu.memory_space<vmem>>, vector<8x32xf32>
    %c0_4 = arith.constant 0 : index
    %c0_5 = arith.constant 0 : index
    %13 = vector.load %arg3[%c0_4, %c0_5] : memref<16x32xf32, #tpu.memory_space<vmem>>, vector<16x32xf32>
    %cst = arith.constant dense<0.000000e+00> : vector<8x32xf32>
    %14 = tpu.matmul %11, %13, %cst {dimension_numbers = #tpu.dot_dimension_numbers<[1], [0], [0], [1], [0, 0, 1, 1], [], []>, precision = #tpu.contract_precision<fp32>} : vector<8x16xf32>, vector<16x32xf32>, vector<8x32xf32> -> vector<8x32xf32>
    %15 = arith.addf %12, %14 : vector<8x32xf32>
    %c0_6 = arith.constant 0 : index
    %c0_7 = arith.constant 0 : index
    %16 = vector.load %arg5[%c0_6, %c0_7] : memref<8x32xf32, #tpu.memory_space<vmem>>, vector<8x32xf32>
    tpu.vector_store %arg5[%c0_6, %c0_7], %15 {strides = array<i32>} : memref<8x32xf32, #tpu.memory_space<vmem>>, vector<8x32xf32>,
    %c0_i32_8 = arith.constant 0 : i32
    %17 = arith.cmpi eq, %arg1, %c0_i32_8 : i32
    %18 = arith.extui %17 : i1 to i32
    %c0_i32_9 = arith.constant 0 : i32
    %19 = arith.cmpi ne, %18, %c0_i32_9 : i32
    scf.if %19 {
      %c0_10 = arith.constant 0 : index
      %c0_11 = arith.constant 0 : index
      %20 = vector.load %arg5[%c0_10, %c0_11] : memref<8x32xf32, #tpu.memory_space<vmem>>, vector<8x32xf32>
      %c0_12 = arith.constant 0 : index
      %c0_13 = arith.constant 0 : index
      %21 = vector.load %arg4[%c0_12, %c0_13] : memref<8x32xf32, #tpu.memory_space<vmem>>, vector<8x32xf32>
      tpu.vector_store %arg4[%c0_12, %c0_13], %20 {strides = array<i32>} : memref<8x32xf32, #tpu.memory_space<vmem>>, vector<8x32xf32>,
    } else {
    }
    return
  }
  func.func @transform_0(%arg0: i32, %arg1: i32) -> (i32, i32) {
    %c0_i32 = arith.constant 0 : i32
    %c0_i32_0 = arith.constant 0 : i32
    return %arg0, %c0_i32 : i32, i32
  }
  func.func @transform_1(%arg0: i32, %arg1: i32) -> (i32, i32) {
    %c0_i32 = arith.constant 0 : i32
    %c0_i32_0 = arith.constant 0 : i32
    return %arg1, %c0_i32 : i32, i32
  }
  func.func @transform_2(%arg0: i32, %arg1: i32) -> (i32, i32) {
    %c0_i32 = arith.constant 0 : i32
    %c0_i32_0 = arith.constant 0 : i32
    return %arg0, %c0_i32 : i32, i32
  }
}

</mosaic_0001>

<llo_original>
// kernel: tpu_custom_call.1
$region0: #{tpu_custom_call.1}
  #allocation0 [shape = 'u32[]', space=smem, size = 0x4, offset = 0x4, fixed_abs, tag = 'smem constant byte address 0x4 - core index']
  #allocation1 [shape = 'u32[144,128]{1,0:T(1,128)}', space=vmem, size = 0x12000, scoped, tag = 'internal scratch']
  #allocation2 [shape = 'f32[8,32]{1,0:T(8,128)}', space=vmem, size = 0x1000, scoped, tag = 'scratch operand']
  %s0 = inlined_call_operand.vmem [shape: s32[16,1], index: 0, kind: input, shape index: {}]
  %s1 = inlined_call_operand.vmem [shape: f32[16,32], index: 1, kind: input, shape index: {}]
  %s2 = inlined_call_operand.hbm [shape: f32[16,32], index: 2, kind: output, shape index: {}]
  %s3 = sld [smem:[#allocation0]]
  $region49: #{tpu_custom_call.1} parent=0
    _
  %s5 = ssub.s32 1, %s3
  %s6 = scalar_select 0, %s5, %s3
  $region1: #{tpu_custom_call.1} parent=0
    #allocation3 [shape = 'u8[8192]{0}', space=vmem, size = 0x2000, scoped, tag = 'output window, operand 0']
    #allocation4 [shape = 's32[2]{0}', space=sflag, size = 0x8, scoped, tag = 'scoped memory for tpu_custom_call.1']
    %7 = vsyncpa [#allocation4], 0
    %s8 = scalar_lea.sflag [#allocation4], 1
    %9 = vsyncpa %s8, 0
    loop: start=0, step=1, limit=4
    $region2: #{tpu_custom_call.1} parent=1 // loop_pre_header
      _
    $region3: #{tpu_custom_call.1} parent=1 // loop_header
      %s11 = sphi 0, %s15
      %p12 = scmp.ge.s32.totalorder %s11, 4
      %s18 = sphi 0, %s30
      %s19 = sphi 0, %s26
      %s20 = sphi 0, %s18
      %s21 = sphi 0, %s19
      %s22 = sphi 0, %s20
      %s23 = sphi 0, %s21
      %s33 = sphi 0, %s35
      %s36 = sphi 0, %s33
      %s37 = sphi 0, %s36
      %s53 = sphi 0, %s37
      %s59 = sphi 0, %s61
      %s62 = sphi 0, %s59
      %s63 = sphi 0, %s62
      %s79 = sphi 0, %s63
      %s85 = sphi 0, %s87
      %s88 = sphi 0, %s85
      %s89 = sphi 0, %s88
      %s105 = sphi 0, %s89
    $region4: #{tpu_custom_call.1} parent=1 // loop_header_branch
      %14 = sbr.rel (%p12) target = $region8
    $region5: #{tpu_custom_call.1} parent=1 // loop_body
      %s16 = ssub.s32 %s11, 1
      %s17 = ssub.s32 %s11, 2
      %s24 = sadd.s32 1, %s19
      %p25 = scmp.ge.s32.totalorder %s24, 1
      %s26 = scalar_select %p25, 0, %s24
      %s27 = sadd.s32 1, %s18
      %s28 = scalar_select %p25, %s27, %s18
      %p29 = scmp.ge.s32.totalorder %s28, 2
      %s30 = scalar_select %p29, 0, %s28
      %s31 = ssub.s32 %s18, %s30
      %p32 = scmp.eq.s32.totalorder %s31, 0
      %s34 = sadd.s32 %s33, 1
      %s35 = scalar_select %p32, %s33, %s34
      %p38 = pneg %p32
      %p39 = scmp.eq.s32.totalorder %s11, 1
      %p40 = por %p38, %p39
      %p41 = scmp.ne.s32.totalorder %s33, %s36
      %p42 = scmp.eq.s32.totalorder %s11, 0
      %p43 = por %p41, %p42
      %p44 = scmp.ne.s32.totalorder %s33, %s36
      %p45 = scmp.eq.s32.totalorder %s16, 1
      %p46 = por %p44, %p45
      %p47 = scmp.ne.s32.totalorder %s36, %s37
      %p48 = scmp.eq.s32.totalorder %s16, 0
      %p49 = por %p47, %p48
      %p50 = scmp.ne.s32.totalorder %s36, %s37
      %p51 = scmp.eq.s32.totalorder %s17, 1
      %p52 = por %p50, %p51
      %p54 = scmp.ne.s32.totalorder %s37, %s53
      %p55 = scmp.eq.s32.totalorder %s17, 0
      %p56 = por %p54, %p55
      %s57 = ssub.s32 %s19, %s26
      %p58 = scmp.eq.s32.totalorder %s57, 0
      %s60 = sadd.s32 %s59, 1
      %s61 = scalar_select %p58, %s59, %s60
      %p64 = pneg %p58
      %p65 = scmp.eq.s32.totalorder %s11, 1
      %p66 = por %p64, %p65
      %p67 = scmp.ne.s32.totalorder %s59, %s62
      %p68 = scmp.eq.s32.totalorder %s11, 0
      %p69 = por %p67, %p68
      %p70 = scmp.ne.s32.totalorder %s59, %s62
      %p71 = scmp.eq.s32.totalorder %s16, 1
      %p72 = por %p70, %p71
      %p73 = scmp.ne.s32.totalorder %s62, %s63
      %p74 = scmp.eq.s32.totalorder %s16, 0
      %p75 = por %p73, %p74
      %p76 = scmp.ne.s32.totalorder %s62, %s63
      %p77 = scmp.eq.s32.totalorder %s17, 1
      %p78 = por %p76, %p77
      %p80 = scmp.ne.s32.totalorder %s63, %s79
      %p81 = scmp.eq.s32.totalorder %s17, 0
      %p82 = por %p80, %p81
      %s83 = ssub.s32 %s18, %s30
      %p84 = scmp.eq.s32.totalorder %s83, 0
      %s86 = sadd.s32 %s85, 1
      %s87 = scalar_select %p84, %s85, %s86
      %p90 = pneg %p84
      %p91 = scmp.eq.s32.totalorder %s11, 1
      %p92 = por %p90, %p91
      %p93 = scmp.ne.s32.totalorder %s85, %s88
      %p94 = scmp.eq.s32.totalorder %s11, 0
      %p95 = por %p93, %p94
      %p96 = scmp.ne.s32.totalorder %s85, %s88
      %p97 = scmp.eq.s32.totalorder %s16, 1
      %p98 = por %p96, %p97
      %p99 = scmp.ne.s32.totalorder %s88, %s89
      %p100 = scmp.eq.s32.totalorder %s16, 0
      %p101 = por %p99, %p100
      %p102 = scmp.ne.s32.totalorder %s88, %s89
      %p103 = scmp.eq.s32.totalorder %s17, 1
      %p104 = por %p102, %p103
      %p106 = scmp.ne.s32.totalorder %s89, %s105
      %p107 = scmp.eq.s32.totalorder %s17, 0
      %p108 = por %p106, %p107
      %p109 = scmp.le.s32.totalorder 1, %s11
      %p110 = scmp.lt.s32.totalorder %s11, 3
      %p111 = pnand %p109, %p110
      %p112 = pneg %p111
      // Predicated region
      $region9: #{tpu_custom_call.1} parent=5 // pred_check
        _
      $region10: #{tpu_custom_call.1} parent=5 // pred_check_branch
        %114 = sbr.rel (%p111) target = $region12
      $region11: #{tpu_custom_call.1} parent=5 // pred_region
        %s115 = ssub.s32 %s11, 1
        // Predicated region
        $region13: #{tpu_custom_call.1} parent=11 // pred_check
          %p116 = pneg %p75
        $region14: #{tpu_custom_call.1} parent=11 // pred_check_branch
          %118 = sbr.rel (%p116) target = $region16
        $region15: #{tpu_custom_call.1} parent=11 // pred_region
          %s119 = smul.u32 2, %s21
          %p120 = scmp.lt.s32.totalorder %s119, 1
          %s121 = scalar_select %p120, %s119, 1
          %s122 = smul.addr %s121, 8
          %s123 = scalar_lea.vmem %s1, %s122
          %s124 = smul.u32 2, %s21
        $region16: #{tpu_custom_call.1} parent=11 // pred_fallthru
          _
      $region12: #{tpu_custom_call.1} parent=5 // pred_fallthru
        _
      %p125 = scmp.lt.s32.totalorder %s11, 2
      // Predicated region
      $region17: #{tpu_custom_call.1} parent=5 // pred_check
        %p126 = pneg %p125
      $region18: #{tpu_custom_call.1} parent=5 // pred_check_branch
        %128 = sbr.rel (%p126) target = $region20
      $region19: #{tpu_custom_call.1} parent=5 // pred_region
        // Predicated region
        $region21: #{tpu_custom_call.1} parent=19 // pred_check
          %p129 = pneg %p43
        $region22: #{tpu_custom_call.1} parent=19 // pred_check_branch
          %131 = sbr.rel (%p129) target = $region24
        $region23: #{tpu_custom_call.1} parent=19 // pred_region
          %p132 = scmp.lt.s32.totalorder %s18, 1
          %s133 = scalar_select %p132, %s18, 1
          %s134 = smul.addr %s133, 8
          %s135 = scalar_lea.vmem %s0, %s134
        $region24: #{tpu_custom_call.1} parent=19 // pred_fallthru
          _
      $region20: #{tpu_custom_call.1} parent=5 // pred_fallthru
        _
      %p136 = scmp.le.s32.totalorder 1, %s11
      %p137 = scmp.lt.s32.totalorder %s11, 3
      %p138 = pnand %p136, %p137
      %p139 = pneg %p138
      // Predicated region
      $region25: #{tpu_custom_call.1} parent=5 // pred_check
        _
      $region26: #{tpu_custom_call.1} parent=5 // pred_check_branch
        %141 = sbr.rel (%p138) target = $region28
      $region27: #{tpu_custom_call.1} parent=5 // pred_region
        %s142 = ssub.s32 %s11, 1
        %p143 = scmp.lt.s32.totalorder %s20, 1
        %s144 = scalar_select %p143, %s20, 1
        %s145 = smul.addr %s144, 8
        %s146 = scalar_lea.vmem %s0, %s145
        %p147 = pneg %p49
        %p148 = pneg %p46
        %s149 = smul.u32 2, %s21
        %p150 = scmp.lt.s32.totalorder %s149, 1
        %s151 = scalar_select %p150, %s149, 1
        %s152 = smul.addr %s151, 8
        %s153 = scalar_lea.vmem %s1, %s152
        %p154 = pneg %p75
        %p155 = pneg %p72
        %p156 = pneg %p101
        %p157 = pneg %p98
        %s158 = sand.u32 %s88, 1
        %s159 = scalar_lea.sflag [#allocation4], %s158
        %s160 = sand.u32 %s88, 1
        %s161 = smul.addr %s160, 8
        %s162 = scalar_lea.vmem [#allocation3], %s161
        %p163 = scmp.lt.s32.totalorder %s20, 1
        %s164 = scalar_select %p163, %s20, 1
        %s165 = smul.addr %s164, 8
        %s166 = scalar_lea.vmem %s0, %s165
        %s167 = smul.u32 2, %s21
        %p168 = scmp.lt.s32.totalorder %s167, 1
        %s169 = scalar_select %p168, %s167, 1
        %s170 = smul.addr %s169, 8
        %s171 = scalar_lea.vmem %s1, %s170
        %s172 = smul.u32 2, %s21
        %p173 = scmp.eq.s32.totalorder %s21, 0
        // Predicated region
        $region29: #{tpu_custom_call.1} parent=27 // pred_check
          %p174 = pneg %p173
        $region30: #{tpu_custom_call.1} parent=27 // pred_check_branch
          %176 = sbr.rel (%p174) target = $region32
        $region31: #{tpu_custom_call.1} parent=27 // pred_region
          %vm177 = vcmask 261120
          %178 = vst.msk [vmem:[#allocation2] sm:$0xff] %vm177, 0.0
        $region32: #{tpu_custom_call.1} parent=27 // pred_fallthru
          _
        %v179 = vld [vmem:[%s166] sm:$0xff]
        %v180 = vlaneseq
        %v181 = vand.u32 %v180, 127
        %s182 = smul.u32 %s21, 16
        %v183 = vstv %s182
        %v184 = vadd.s32 %v181, %v183
        %185 = vset.pattern.permute.xlu0 0
        %186 = vperm.xlu0 %185, %v179
        %v187 = vpop.permute.xlu0 %186
        %vm188 = vcmp.eq.s32.totalorder %v184, %v187
        %v189 = vsel %vm188, 1, 0
        %v190 = vcvt.s32.f32 %v189
        %v191 = vld [vmem:[#allocation2] sm:$0xff]
        %v192 = vld [vmem:[%s171] sm:$0xff]
        %v193 = vld [vmem:[%s171 + $0x8] sm:$0xff]
        %vm194 = vcmask 130048
        %v196 = vsel %vm194, %v190, 0
        %198 = vmatprep.subr.mxu0 0.0
        %199 = vmatpush1.msra.mxu0 0.0
        %200 = vmatprep.subr.mxu0 0.0
        %201 = vmatpush1.msra.mxu0 0.0
        %202 = vmatprep.subr.mxu0 0.0
        %203 = vmatpush1.msra.mxu0 0.0
        %204 = vmatprep.subr.mxu0 0.0
        %205 = vmatpush1.msra.mxu0 0.0
        %206 = vmatprep.subr.mxu0 0.0
        %207 = vmatpush1.msra.mxu0 0.0
        %208 = vmatprep.subr.mxu0 0.0
        %209 = vmatpush1.msra.mxu0 0.0
        %210 = vmatprep.subr.mxu0 0.0
        %211 = vmatpush1.msra.mxu0 0.0
        %212 = vmatprep.subr.mxu0 0.0
        %213 = vmatpush1.msra.mxu0 0.0
        %214 = vmatprep.subr.mxu0 0.0
        %215 = vmatpush1.msra.mxu0 0.0
        %216 = vmatprep.subr.mxu0 0.0
        %217 = vmatpush1.msra.mxu0 0.0
        %218 = vmatprep.subr.mxu0 0.0
        %219 = vmatpush1.msra.mxu0 0.0
        %220 = vmatprep.subr.mxu0 0.0
        %221 = vmatpush1.msra.mxu0 0.0
        %222 = vmatprep.subr.mxu0 0.0
        %223 = vmatpush1.msra.mxu0 0.0
        %224 = vmatprep.subr.mxu0 0.0
        %225 = vmatpush1.msra.mxu0 0.0
        %226 = vmatprep.subr.mxu0 0.0
        %v227 = vand.u32 %v193, 4294901760
        %228 = vmatpush1.msra.mxu0 %v227
        %229 = vmatprep.subr.mxu0 0.0
        %v230 = vand.u32 %v192, 4294901760
        %231 = vmatpush1.msra.mxu0 %v230
        %232 = vmatprep.subr.mxu0 0.0
        %233 = vmatpush2.msra.mxu0 0.0
        %234 = vmatprep.subr.mxu0 0.0
        %235 = vmatpush2.msra.mxu0 0.0
        %236 = vmatprep.subr.mxu0 0.0
        %237 = vmatpush2.msra.mxu0 0.0
        %238 = vmatprep.subr.mxu0 0.0
        %239 = vmatpush2.msra.mxu0 0.0
        %240 = vmatprep.subr.mxu0 0.0
        %241 = vmatpush2.msra.mxu0 0.0
        %242 = vmatprep.subr.mxu0 0.0
        %243 = vmatpush2.msra.mxu0 0.0
        %244 = vmatprep.subr.mxu0 0.0
        %245 = vmatpush2.msra.mxu0 0.0
        %246 = vmatprep.subr.mxu0 0.0
        %247 = vmatpush2.msra.mxu0 0.0
        %248 = vmatprep.subr.mxu0 0.0
        %249 = vmatpush2.msra.mxu0 0.0
        %250 = vmatprep.subr.mxu0 0.0
        %251 = vmatpush2.msra.mxu0 0.0
        %252 = vmatprep.subr.mxu0 0.0
        %253 = vmatpush2.msra.mxu0 0.0
        %254 = vmatprep.subr.mxu0 0.0
        %255 = vmatpush2.msra.mxu0 0.0
        %256 = vmatprep.subr.mxu0 0.0
        %257 = vmatpush2.msra.mxu0 0.0
        %258 = vmatprep.subr.mxu0 0.0
        %259 = vmatpush2.msra.mxu0 0.0
        %260 = vmatprep.subr.mxu0 0.0
        %261 = vmatpush2.msra.mxu0 0.0
        %262 = vmatprep.subr.mxu0 0.0
        %263 = vmatpush2.msra.mxu0 0.0
        %264 = vmatprep.mubr.f32.mxu0 0.0
        %v265 = vand.u32 %v196, 4294901760
        %v266 = vsub.f32 %v196, %v265
        %v267 = vand.u32 %v266, 4294901760
        %v268 = vsub.f32 %v266, %v267
        %v269 = vand.u32 %v268, 4294901760
        %270 = vmatmul.mubr.f32.gmra.mxu0 %v269
        %v271 = vpop.f32.mrf.mxu0
        %v272 = vadd.f32 0.0, %v271
        %v273 = vpop.f32.mrf.mxu0
        %274 = vdwg.mxu0
        %275 = vmatprep.subr.mxu0 0.0
        %276 = vmatpush1.msra.mxu0 0.0
        %277 = vmatprep.subr.mxu0 0.0
        %278 = vmatpush1.msra.mxu0 0.0
        %279 = vmatprep.subr.mxu0 0.0
        %280 = vmatpush1.msra.mxu0 0.0
        %281 = vmatprep.subr.mxu0 0.0
        %282 = vmatpush1.msra.mxu0 0.0
        %283 = vmatprep.subr.mxu0 0.0
        %284 = vmatpush1.msra.mxu0 0.0
        %285 = vmatprep.subr.mxu0 0.0
        %286 = vmatpush1.msra.mxu0 0.0
        %287 = vmatprep.subr.mxu0 0.0
        %288 = vmatpush1.msra.mxu0 0.0
        %289 = vmatprep.subr.mxu0 0.0
        %290 = vmatpush1.msra.mxu0 0.0
        %291 = vmatprep.subr.mxu0 0.0
        %292 = vmatpush1.msra.mxu0 0.0
        %293 = vmatprep.subr.mxu0 0.0
        %294 = vmatpush1.msra.mxu0 0.0
        %295 = vmatprep.subr.mxu0 0.0
        %296 = vmatpush1.msra.mxu0 0.0
        %297 = vmatprep.subr.mxu0 0.0
        %298 = vmatpush1.msra.mxu0 0.0
        %299 = vmatprep.subr.mxu0 0.0
        %300 = vmatpush1.msra.mxu0 0.0
        %301 = vmatprep.subr.mxu0 0.0
        %302 = vmatpush1.msra.mxu0 0.0
        %303 = vmatprep.subr.mxu0 0.0
        %v304 = vand.u32 %v193, 4294901760
        %v305 = vsub.f32 %v193, %v304
        %v306 = vand.u32 %v305, 4294901760
        %v307 = vsub.f32 %v305, %v306
        %v308 = vand.u32 %v307, 4294901760
        %309 = vmatpush1.msra.mxu0 %v308
        %310 = vmatprep.subr.mxu0 0.0
        %v311 = vand.u32 %v192, 4294901760
        %v312 = vsub.f32 %v192, %v311
        %v313 = vand.u32 %v312, 4294901760
        %v314 = vsub.f32 %v312, %v313
        %v315 = vand.u32 %v314, 4294901760
        %316 = vmatpush1.msra.mxu0 %v315
        %317 = vmatprep.subr.mxu0 0.0
        %318 = vmatpush2.msra.mxu0 0.0
        %319 = vmatprep.subr.mxu0 0.0
        %320 = vmatpush2.msra.mxu0 0.0
        %321 = vmatprep.subr.mxu0 0.0
        %322 = vmatpush2.msra.mxu0 0.0
        %323 = vmatprep.subr.mxu0 0.0
        %324 = vmatpush2.msra.mxu0 0.0
        %325 = vmatprep.subr.mxu0 0.0
        %326 = vmatpush2.msra.mxu0 0.0
        %327 = vmatprep.subr.mxu0 0.0
        %328 = vmatpush2.msra.mxu0 0.0
        %329 = vmatprep.subr.mxu0 0.0
        %330 = vmatpush2.msra.mxu0 0.0
        %331 = vmatprep.subr.mxu0 0.0
        %332 = vmatpush2.msra.mxu0 0.0
        %333 = vmatprep.subr.mxu0 0.0
        %334 = vmatpush2.msra.mxu0 0.0
        %335 = vmatprep.subr.mxu0 0.0
        %336 = vmatpush2.msra.mxu0 0.0
        %337 = vmatprep.subr.mxu0 0.0
        %338 = vmatpush2.msra.mxu0 0.0
        %339 = vmatprep.subr.mxu0 0.0
        %340 = vmatpush2.msra.mxu0 0.0
        %341 = vmatprep.subr.mxu0 0.0
        %342 = vmatpush2.msra.mxu0 0.0
        %343 = vmatprep.subr.mxu0 0.0
        %344 = vmatpush2.msra.mxu0 0.0
        %345 = vmatprep.subr.mxu0 0.0
        %346 = vmatpush2.msra.mxu0 0.0
        %347 = vmatprep.subr.mxu0 0.0
        %348 = vmatpush2.msra.mxu0 0.0
        %349 = vmatprep.mubr.f32.mxu0 0.0
        %v350 = vand.u32 %v196, 4294901760
        %351 = vmatmul.mubr.f32.gmra.mxu0 %v350
        %v352 = vpop.f32.mrf.mxu0
        %v353 = vadd.f32 %v272, %v352
        %v354 = vpop.f32.mrf.mxu0
        %355 = vdwg.mxu0
        %356 = vmatprep.subr.mxu0 0.0
        %357 = vmatpush1.msra.mxu0 0.0
        %358 = vmatprep.subr.mxu0 0.0
        %359 = vmatpush1.msra.mxu0 0.0
        %360 = vmatprep.subr.mxu0 0.0
        %361 = vmatpush1.msra.mxu0 0.0
        %362 = vmatprep.subr.mxu0 0.0
        %363 = vmatpush1.msra.mxu0 0.0
        %364 = vmatprep.subr.mxu0 0.0
        %365 = vmatpush1.msra.mxu0 0.0
        %366 = vmatprep.subr.mxu0 0.0
        %367 = vmatpush1.msra.mxu0 0.0
        %368 = vmatprep.subr.mxu0 0.0
        %369 = vmatpush1.msra.mxu0 0.0
        %370 = vmatprep.subr.mxu0 0.0
        %371 = vmatpush1.msra.mxu0 0.0
        %372 = vmatprep.subr.mxu0 0.0
        %373 = vmatpush1.msra.mxu0 0.0
        %374 = vmatprep.subr.mxu0 0.0
        %375 = vmatpush1.msra.mxu0 0.0
        %376 = vmatprep.subr.mxu0 0.0
        %377 = vmatpush1.msra.mxu0 0.0
        %378 = vmatprep.subr.mxu0 0.0
        %379 = vmatpush1.msra.mxu0 0.0
        %380 = vmatprep.subr.mxu0 0.0
        %381 = vmatpush1.msra.mxu0 0.0
        %382 = vmatprep.subr.mxu0 0.0
        %383 = vmatpush1.msra.mxu0 0.0
        %384 = vmatprep.subr.mxu0 0.0
        %v385 = vand.u32 %v193, 4294901760
        %v386 = vsub.f32 %v193, %v385
        %387 = vmatpush1.msra.mxu0 %v386
        %388 = vmatprep.subr.mxu0 0.0
        %v389 = vand.u32 %v192, 4294901760
        %v390 = vsub.f32 %v192, %v389
        %391 = vmatpush1.msra.mxu0 %v390
        %392 = vmatprep.subr.mxu0 0.0
        %393 = vmatpush2.msra.mxu0 0.0
        %394 = vmatprep.subr.mxu0 0.0
        %395 = vmatpush2.msra.mxu0 0.0
        %396 = vmatprep.subr.mxu0 0.0
        %397 = vmatpush2.msra.mxu0 0.0
        %398 = vmatprep.subr.mxu0 0.0
        %399 = vmatpush2.msra.mxu0 0.0
        %400 = vmatprep.subr.mxu0 0.0
        %401 = vmatpush2.msra.mxu0 0.0
        %402 = vmatprep.subr.mxu0 0.0
        %403 = vmatpush2.msra.mxu0 0.0
        %404 = vmatprep.subr.mxu0 0.0
        %405 = vmatpush2.msra.mxu0 0.0
        %406 = vmatprep.subr.mxu0 0.0
        %407 = vmatpush2.msra.mxu0 0.0
        %408 = vmatprep.subr.mxu0 0.0
        %409 = vmatpush2.msra.mxu0 0.0
        %410 = vmatprep.subr.mxu0 0.0
        %411 = vmatpush2.msra.mxu0 0.0
        %412 = vmatprep.subr.mxu0 0.0
        %413 = vmatpush2.msra.mxu0 0.0
        %414 = vmatprep.subr.mxu0 0.0
        %415 = vmatpush2.msra.mxu0 0.0
        %416 = vmatprep.subr.mxu0 0.0
        %417 = vmatpush2.msra.mxu0 0.0
        %418 = vmatprep.subr.mxu0 0.0
        %419 = vmatpush2.msra.mxu0 0.0
        %420 = vmatprep.subr.mxu0 0.0
        %421 = vmatpush2.msra.mxu0 0.0
        %422 = vmatprep.subr.mxu0 0.0
        %423 = vmatpush2.msra.mxu0 0.0
        %424 = vmatprep.mubr.f32.mxu0 0.0
        %v425 = vand.u32 %v196, 4294901760
        %v426 = vsub.f32 %v196, %v425
        %427 = vmatmul.mubr.f32.gmra.mxu0 %v426
        %v428 = vpop.f32.mrf.mxu0
        %v429 = vadd.f32 %v353, %v428
        %v430 = vpop.f32.mrf.mxu0
        %431 = vdwg.mxu0
        %432 = vmatprep.subr.mxu0 0.0
        %433 = vmatpush1.msra.mxu0 0.0
        %434 = vmatprep.subr.mxu0 0.0
        %435 = vmatpush1.msra.mxu0 0.0
        %436 = vmatprep.subr.mxu0 0.0
        %437 = vmatpush1.msra.mxu0 0.0
        %438 = vmatprep.subr.mxu0 0.0
        %439 = vmatpush1.msra.mxu0 0.0
        %440 = vmatprep.subr.mxu0 0.0
        %441 = vmatpush1.msra.mxu0 0.0
        %442 = vmatprep.subr.mxu0 0.0
        %443 = vmatpush1.msra.mxu0 0.0
        %444 = vmatprep.subr.mxu0 0.0
        %445 = vmatpush1.msra.mxu0 0.0
        %446 = vmatprep.subr.mxu0 0.0
        %447 = vmatpush1.msra.mxu0 0.0
        %448 = vmatprep.subr.mxu0 0.0
        %449 = vmatpush1.msra.mxu0 0.0
        %450 = vmatprep.subr.mxu0 0.0
        %451 = vmatpush1.msra.mxu0 0.0
        %452 = vmatprep.subr.mxu0 0.0
        %453 = vmatpush1.msra.mxu0 0.0
        %454 = vmatprep.subr.mxu0 0.0
        %455 = vmatpush1.msra.mxu0 0.0
        %456 = vmatprep.subr.mxu0 0.0
        %457 = vmatpush1.msra.mxu0 0.0
        %458 = vmatprep.subr.mxu0 0.0
        %459 = vmatpush1.msra.mxu0 0.0
        %460 = vmatprep.subr.mxu0 0.0
        %v461 = vand.u32 %v193, 4294901760
        %462 = vmatpush1.msra.mxu0 %v461
        %463 = vmatprep.subr.mxu0 0.0
        %v464 = vand.u32 %v192, 4294901760
        %465 = vmatpush1.msra.mxu0 %v464
        %466 = vmatprep.subr.mxu0 0.0
        %467 = vmatpush2.msra.mxu0 0.0
        %468 = vmatprep.subr.mxu0 0.0
        %469 = vmatpush2.msra.mxu0 0.0
        %470 = vmatprep.subr.mxu0 0.0
        %471 = vmatpush2.msra.mxu0 0.0
        %472 = vmatprep.subr.mxu0 0.0
        %473 = vmatpush2.msra.mxu0 0.0
        %474 = vmatprep.subr.mxu0 0.0
        %475 = vmatpush2.msra.mxu0 0.0
        %476 = vmatprep.subr.mxu0 0.0
        %477 = vmatpush2.msra.mxu0 0.0
        %478 = vmatprep.subr.mxu0 0.0
        %479 = vmatpush2.msra.mxu0 0.0
        %480 = vmatprep.subr.mxu0 0.0
        %481 = vmatpush2.msra.mxu0 0.0
        %482 = vmatprep.subr.mxu0 0.0
        %483 = vmatpush2.msra.mxu0 0.0
        %484 = vmatprep.subr.mxu0 0.0
        %485 = vmatpush2.msra.mxu0 0.0
        %486 = vmatprep.subr.mxu0 0.0
        %487 = vmatpush2.msra.mxu0 0.0
        %488 = vmatprep.subr.mxu0 0.0
        %489 = vmatpush2.msra.mxu0 0.0
        %490 = vmatprep.subr.mxu0 0.0
        %491 = vmatpush2.msra.mxu0 0.0
        %492 = vmatprep.subr.mxu0 0.0
        %493 = vmatpush2.msra.mxu0 0.0
        %494 = vmatprep.subr.mxu0 0.0
        %495 = vmatpush2.msra.mxu0 0.0
        %496 = vmatprep.subr.mxu0 0.0
        %497 = vmatpush2.msra.mxu0 0.0
        %498 = vmatprep.mubr.f32.mxu0 0.0
        %v499 = vand.u32 %v196, 4294901760
        %v500 = vsub.f32 %v196, %v499
        %v501 = vand.u32 %v500, 4294901760
        %502 = vmatmul.mubr.f32.gmra.mxu0 %v501
        %v503 = vpop.f32.mrf.mxu0
        %v504 = vadd.f32 %v429, %v503
        %v505 = vpop.f32.mrf.mxu0
        %506 = vdwg.mxu0
        %507 = vmatprep.subr.mxu0 0.0
        %508 = vmatpush1.msra.mxu0 0.0
        %509 = vmatprep.subr.mxu0 0.0
        %510 = vmatpush1.msra.mxu0 0.0
        %511 = vmatprep.subr.mxu0 0.0
        %512 = vmatpush1.msra.mxu0 0.0
        %513 = vmatprep.subr.mxu0 0.0
        %514 = vmatpush1.msra.mxu0 0.0
        %515 = vmatprep.subr.mxu0 0.0
        %516 = vmatpush1.msra.mxu0 0.0
        %517 = vmatprep.subr.mxu0 0.0
        %518 = vmatpush1.msra.mxu0 0.0
        %519 = vmatprep.subr.mxu0 0.0
        %520 = vmatpush1.msra.mxu0 0.0
        %521 = vmatprep.subr.mxu0 0.0
        %522 = vmatpush1.msra.mxu0 0.0
        %523 = vmatprep.subr.mxu0 0.0
        %524 = vmatpush1.msra.mxu0 0.0
        %525 = vmatprep.subr.mxu0 0.0
        %526 = vmatpush1.msra.mxu0 0.0
        %527 = vmatprep.subr.mxu0 0.0
        %528 = vmatpush1.msra.mxu0 0.0
        %529 = vmatprep.subr.mxu0 0.0
        %530 = vmatpush1.msra.mxu0 0.0
        %531 = vmatprep.subr.mxu0 0.0
        %532 = vmatpush1.msra.mxu0 0.0
        %533 = vmatprep.subr.mxu0 0.0
        %534 = vmatpush1.msra.mxu0 0.0
        %535 = vmatprep.subr.mxu0 0.0
        %v536 = vand.u32 %v193, 4294901760
        %v537 = vsub.f32 %v193, %v536
        %v538 = vand.u32 %v537, 4294901760
        %539 = vmatpush1.msra.mxu0 %v538
        %540 = vmatprep.subr.mxu0 0.0
        %v541 = vand.u32 %v192, 4294901760
        %v542 = vsub.f32 %v192, %v541
        %v543 = vand.u32 %v542, 4294901760
        %544 = vmatpush1.msra.mxu0 %v543
        %545 = vmatprep.subr.mxu0 0.0
        %546 = vmatpush2.msra.mxu0 0.0
        %547 = vmatprep.subr.mxu0 0.0
        %548 = vmatpush2.msra.mxu0 0.0
        %549 = vmatprep.subr.mxu0 0.0
        %550 = vmatpush2.msra.mxu0 0.0
        %551 = vmatprep.subr.mxu0 0.0
        %552 = vmatpush2.msra.mxu0 0.0
        %553 = vmatprep.subr.mxu0 0.0
        %554 = vmatpush2.msra.mxu0 0.0
        %555 = vmatprep.subr.mxu0 0.0
        %556 = vmatpush2.msra.mxu0 0.0
        %557 = vmatprep.subr.mxu0 0.0
        %558 = vmatpush2.msra.mxu0 0.0
        %559 = vmatprep.subr.mxu0 0.0
        %560 = vmatpush2.msra.mxu0 0.0
        %561 = vmatprep.subr.mxu0 0.0
        %562 = vmatpush2.msra.mxu0 0.0
        %563 = vmatprep.subr.mxu0 0.0
        %564 = vmatpush2.msra.mxu0 0.0
        %565 = vmatprep.subr.mxu0 0.0
        %566 = vmatpush2.msra.mxu0 0.0
        %567 = vmatprep.subr.mxu0 0.0
        %568 = vmatpush2.msra.mxu0 0.0
        %569 = vmatprep.subr.mxu0 0.0
        %570 = vmatpush2.msra.mxu0 0.0
        %571 = vmatprep.subr.mxu0 0.0
        %572 = vmatpush2.msra.mxu0 0.0
        %573 = vmatprep.subr.mxu0 0.0
        %574 = vmatpush2.msra.mxu0 0.0
        %575 = vmatprep.subr.mxu0 0.0
        %576 = vmatpush2.msra.mxu0 0.0
        %577 = vmatprep.mubr.f32.mxu0 0.0
        %v578 = vand.u32 %v196, 4294901760
        %579 = vmatmul.mubr.f32.gmra.mxu0 %v578
        %v580 = vpop.f32.mrf.mxu0
        %v581 = vadd.f32 %v504, %v580
        %v582 = vpop.f32.mrf.mxu0
        %583 = vdwg.mxu0
        %584 = vmatprep.subr.mxu0 0.0
        %585 = vmatpush1.msra.mxu0 0.0
        %586 = vmatprep.subr.mxu0 0.0
        %587 = vmatpush1.msra.mxu0 0.0
        %588 = vmatprep.subr.mxu0 0.0
        %589 = vmatpush1.msra.mxu0 0.0
        %590 = vmatprep.subr.mxu0 0.0
        %591 = vmatpush1.msra.mxu0 0.0
        %592 = vmatprep.subr.mxu0 0.0
        %593 = vmatpush1.msra.mxu0 0.0
        %594 = vmatprep.subr.mxu0 0.0
        %595 = vmatpush1.msra.mxu0 0.0
        %596 = vmatprep.subr.mxu0 0.0
        %597 = vmatpush1.msra.mxu0 0.0
        %598 = vmatprep.subr.mxu0 0.0
        %599 = vmatpush1.msra.mxu0 0.0
        %600 = vmatprep.subr.mxu0 0.0
        %601 = vmatpush1.msra.mxu0 0.0
        %602 = vmatprep.subr.mxu0 0.0
        %603 = vmatpush1.msra.mxu0 0.0
        %604 = vmatprep.subr.mxu0 0.0
        %605 = vmatpush1.msra.mxu0 0.0
        %606 = vmatprep.subr.mxu0 0.0
        %607 = vmatpush1.msra.mxu0 0.0
        %608 = vmatprep.subr.mxu0 0.0
        %609 = vmatpush1.msra.mxu0 0.0
        %610 = vmatprep.subr.mxu0 0.0
        %611 = vmatpush1.msra.mxu0 0.0
        %612 = vmatprep.subr.mxu0 0.0
        %v613 = vand.u32 %v193, 4294901760
        %614 = vmatpush1.msra.mxu0 %v613
        %615 = vmatprep.subr.mxu0 0.0
        %v616 = vand.u32 %v192, 4294901760
        %617 = vmatpush1.msra.mxu0 %v616
        %618 = vmatprep.subr.mxu0 0.0
        %619 = vmatpush2.msra.mxu0 0.0
        %620 = vmatprep.subr.mxu0 0.0
        %621 = vmatpush2.msra.mxu0 0.0
        %622 = vmatprep.subr.mxu0 0.0
        %623 = vmatpush2.msra.mxu0 0.0
        %624 = vmatprep.subr.mxu0 0.0
        %625 = vmatpush2.msra.mxu0 0.0
        %626 = vmatprep.subr.mxu0 0.0
        %627 = vmatpush2.msra.mxu0 0.0
        %628 = vmatprep.subr.mxu0 0.0
        %629 = vmatpush2.msra.mxu0 0.0
        %630 = vmatprep.subr.mxu0 0.0
        %631 = vmatpush2.msra.mxu0 0.0
        %632 = vmatprep.subr.mxu0 0.0
        %633 = vmatpush2.msra.mxu0 0.0
        %634 = vmatprep.subr.mxu0 0.0
        %635 = vmatpush2.msra.mxu0 0.0
        %636 = vmatprep.subr.mxu0 0.0
        %637 = vmatpush2.msra.mxu0 0.0
        %638 = vmatprep.subr.mxu0 0.0
        %639 = vmatpush2.msra.mxu0 0.0
        %640 = vmatprep.subr.mxu0 0.0
        %641 = vmatpush2.msra.mxu0 0.0
        %642 = vmatprep.subr.mxu0 0.0
        %643 = vmatpush2.msra.mxu0 0.0
        %644 = vmatprep.subr.mxu0 0.0
        %645 = vmatpush2.msra.mxu0 0.0
        %646 = vmatprep.subr.mxu0 0.0
        %647 = vmatpush2.msra.mxu0 0.0
        %648 = vmatprep.subr.mxu0 0.0
        %649 = vmatpush2.msra.mxu0 0.0
        %650 = vmatprep.mubr.f32.mxu0 0.0
        %v651 = vand.u32 %v196, 4294901760
        %652 = vmatmul.mubr.f32.gmra.mxu0 %v651
        %v653 = vpop.f32.mrf.mxu0
        %v654 = vadd.f32 %v581, %v653
        %v655 = vpop.f32.mrf.mxu0
        %656 = vdwg.mxu0
        %v657 = vadd.f32 %v191, %v654
        %vm658 = vcmask 261120
        %659 = vst.msk [vmem:[#allocation2] sm:$0xff] %vm658, %v657
        // Predicated region
        $region33: #{tpu_custom_call.1} parent=27 // pred_check
          %p660 = pneg %p173
        $region34: #{tpu_custom_call.1} parent=27 // pred_check_branch
          %662 = sbr.rel (%p660) target = $region36
        $region35: #{tpu_custom_call.1} parent=27 // pred_region
          %v663 = vld [vmem:[#allocation2] sm:$0xff]
          %664 = vst.msk [vmem:[%s162] sm:$0xff] %vm658, %v663
        $region36: #{tpu_custom_call.1} parent=27 // pred_fallthru
          _
        %s665 = sand.u32 %s88, 1
        %s666 = scalar_lea.sflag [#allocation4], %s665
        %s667 = sand.u32 %s88, 1
        %s668 = smul.addr %s667, 8
        %s669 = scalar_lea.vmem [#allocation3], %s668
        // Predicated region
        $region37: #{tpu_custom_call.1} parent=27 // pred_check
          %p670 = pneg %p98
        $region38: #{tpu_custom_call.1} parent=27 // pred_check_branch
          %672 = sbr.rel (%p670) target = $region40
        $region39: #{tpu_custom_call.1} parent=27 // pred_region
          %s674 = ssub.s32 128, 128
          %675 = vsyncadd %s666, %s674
          %s676 = smul.addr %s20, 128
          %s677 = scalar_lea.hbm %s2, %s676
          %s679 = sshll.u32 %s669, 4
          %s680 = int_to_ptr.vmem [resolvable:$true] %s679
          %682 = dma.vmem_to_hbm [thread:$0]  %s680, 128, %s677, %s666
        $region40: #{tpu_custom_call.1} parent=27 // pred_fallthru
          _
      $region28: #{tpu_custom_call.1} parent=5 // pred_fallthru
        _
      %p683 = scmp.le.s32.totalorder 2, %s11
      // Predicated region
      $region41: #{tpu_custom_call.1} parent=5 // pred_check
        %p684 = pneg %p683
      $region42: #{tpu_custom_call.1} parent=5 // pred_check_branch
        %686 = sbr.rel (%p684) target = $region44
      $region43: #{tpu_custom_call.1} parent=5 // pred_region
        %s687 = ssub.s32 %s11, 2
        // Predicated region
        $region45: #{tpu_custom_call.1} parent=43 // pred_check
          %p688 = pneg %p104
        $region46: #{tpu_custom_call.1} parent=43 // pred_check_branch
          %690 = sbr.rel (%p688) target = $region48
        $region47: #{tpu_custom_call.1} parent=43 // pred_region
          %s691 = sand.u32 %s89, 1
          %s692 = scalar_lea.sflag [#allocation4], %s691
          %s693 = sand.u32 %s89, 1
          %s694 = smul.addr %s693, 8
          %s695 = scalar_lea.vmem [#allocation3], %s694
          %696 = dma.done %s692, 128
        $region48: #{tpu_custom_call.1} parent=43 // pred_fallthru
          _
      $region44: #{tpu_custom_call.1} parent=5 // pred_fallthru
        _
    $region6: #{tpu_custom_call.1} parent=1 // loop_footer
      %s15 = sadd.s32 1, %s11
    $region7: #{tpu_custom_call.1} parent=1 // loop_footer_branch
      %10 = sbr.rel target = $region3
    $region8: #{tpu_custom_call.1} parent=1 // loop_exit
      _
    %697 = vsyncpa [#allocation4], 1
    %s698 = scalar_lea.sflag [#allocation4], 1
    %699 = vsyncpa %s698, 1

</llo_original>
